<compile_context>
chip_gen: v7x
topology: tpu7x:2x2x1
jax: 0.10.0
libtpu: 0.0.40
codegen_flags: <defaults>
</compile_context>

<pallas_src>
from functools import partial

import jax
import jax.numpy as jnp
import numpy as np
from jax.experimental import pallas as pl
from jax.experimental.pallas import tpu as pltpu


def _acos_f32(x):
    """arccos via A&S 4.4.46 polynomial (|err| <= 2e-8 on [0,1], reflected for x<0).

    TODO(synk): jnp.arccos has no Mosaic TPU lowering; this polynomial keeps the
    whole SAM term inside the kernel.
    """
    ax = jnp.abs(x)
    p = -0.0012624911
    p = p * ax + 0.0066700901
    p = p * ax - 0.0170881256
    p = p * ax + 0.0308918810
    p = p * ax - 0.0501743046
    p = p * ax + 0.0889789874
    p = p * ax - 0.2145988016
    p = p * ax + 1.5707963050
    r = jnp.sqrt(jnp.maximum(1.0 - ax, 0.0)) * p
    return jnp.where(x >= 0, r, np.pi - r)


def _hloss2_kernel(y_ref, gt_ref, part_ref, prev_ref, *, W):
    """Fused per-(batch, H-tile) pass.

    y_ref, gt_ref : (1, C, TH*W) blocks in native dtype (lane-dense layout)
    part_ref      : (1, 1, 128) f32 per-batch accumulator row; lanes [0..4] =
                    [sum|y-gt|, h_tv, w_tv, c_tv, sum(acos(cos))]
    prev_ref      : (C, W) f32 scratch carrying the last row of the previous
                    H-tile (cross-tile h-direction diff).
    """
    esp = 1e-6
    j = pl.program_id(1)

    y = y_ref[0].astype(jnp.float32)      # (C, THW)
    gt = gt_ref[0].astype(jnp.float32)
    C, THW = y.shape

    first_row = y[:, :W]                  # (C, W)

    @pl.when(j == 0)
    def _init():
        part_ref[0] = jnp.zeros((1, 128), jnp.float32)
        prev_ref[...] = first_row         # -> cross-tile diff below is exactly 0

    # ---- L1 fidelity partial (global mean finished in the glue) --------------
    abs_sum = jnp.sum(jnp.abs(y - gt))

    # ---- SAM: channel (sublane) reductions + in-kernel arccos ----------------
    inner = jnp.sum(y * gt, axis=0, keepdims=True)     # (1, THW)
    n1 = jnp.sum(y * y, axis=0, keepdims=True)
    n2 = jnp.sum(gt * gt, axis=0, keepdims=True)
    divisor = jnp.sqrt(n1) * jnp.sqrt(n2)
    divisor = jnp.where(divisor == 0.0, esp, divisor)   # exact reference semantics
    cosA = jnp.clip(inner / divisor, -1.0 + esp, 1.0 - esp)
    acos_sum = jnp.sum(_acos_f32(cosA))

    # ---- spatial TV, h-direction (flat pairs (i, i+W)) ------------------------
    cross = first_row - prev_ref[...]     # boundary row against previous tile
    h_tv = jnp.sum(cross * cross)
    if THW > W:                           # within-tile row diffs
        hd = y[:, W:] - y[:, :THW - W]
        h_tv = h_tv + jnp.sum(hd * hd)
    prev_ref[...] = y[:, THW - W:]        # carry last row for the next tile

    # ---- spatial TV, w-direction (flat pairs (i, i+1), masked at row ends) ----
    # TODO(synk): unaligned lane slices could be swapped for pltpu.roll + mask
    # (XLU instead of lane shuffles) if the VALU slot ever becomes binding.
    if THW > 1:
        wd = y[:, 1:] - y[:, :THW - 1]
        col = jax.lax.broadcasted_iota(jnp.int32, (1, THW - 1), 1)
        wd = jnp.where((col % W) != (W - 1), wd, 0.0)   # (1,·) mask bcast over C
        w_tv = jnp.sum(wd * wd)
    else:
        w_tv = jnp.float32(0.0)

    # ---- spectral TV (channel / sublane diff) ----------------------------------
    if C > 1:
        cd = y[1:, :] - y[:C - 1, :]
        c_tv = jnp.sum(cd * cd)
    else:
        c_tv = jnp.float32(0.0)

    # ---- accumulate the 5 partial sums into the lane-dense per-batch row -------
    lane = jax.lax.broadcasted_iota(jnp.int32, (1, 128), 1)
    row = (jnp.where(lane == 0, abs_sum, 0.0)
           + jnp.where(lane == 1, h_tv, 0.0)
           + jnp.where(lane == 2, w_tv, 0.0)
           + jnp.where(lane == 3, c_tv, 0.0)
           + jnp.where(lane == 4, acos_sum, 0.0))
    part_ref[0] = part_ref[0] + row


def _pick_tile_rows(H, W, C, itemsize, budget_bytes, max_rows_per_tile=None):
    """Largest H-tile whose double-buffered input footprint fits the VMEM budget."""
    cap = H if max_rows_per_tile is None else min(H, max(1, int(max_rows_per_tile)))
    cands = [th for th in range(1, H + 1)
             if H % th == 0 and (th == H or (th * W) % 128 == 0) and th <= cap]
    if not cands:
        cands = [H]                       # fall back to the full image
    fits = [th for th in cands if 4 * C * th * W * itemsize <= budget_bytes]
    return max(fits) if fits else min(cands)


def hloss2(y, gt, la1=0.1, la2=0.1, *, max_rows_per_tile=None):
    """JAX equivalent of HLoss2(la1, la2).forward(y, gt) (NCHW inputs)."""
    B, C, H, W = y.shape
    HW = H * W
    itemsize = jnp.dtype(y.dtype).itemsize

    # Inputs go into the kernel in their native dtype (upcast to f32 in VMEM).
    y2 = y.reshape(B, C, HW)
    gt2 = gt.reshape(B, C, HW)

    # 2 inputs x 2 pipeline buffers per tile kept under ~8 MiB: safe under the
    # 16/32 MiB default scoped VMEM on v5e/v6e and v7x's 64 MiB physical ceiling.
    TH = _pick_tile_rows(H, W, C, itemsize, 8 * 1024 * 1024, max_rows_per_tile)
    n_tiles = H // TH
    THW = TH * W

    kernel = partial(_hloss2_kernel, W=W)
    cost = pl.CostEstimate(
        flops=int(30 * B * C * HW),
        transcendentals=int(4 * B * HW),
        bytes_accessed=int(2 * B * C * HW * itemsize + B * 128 * 4),
    )

    partials = pl.pallas_call(
        kernel,
        out_shape=jax.ShapeDtypeStruct((B, 1, 128), jnp.float32),
        grid=(B, n_tiles),
        in_specs=[
            pl.BlockSpec((1, C, THW), lambda b, j: (b, 0, j)),
            pl.BlockSpec((1, C, THW), lambda b, j: (b, 0, j)),
        ],
        out_specs=pl.BlockSpec((1, 1, 128), lambda b, j: (b, 0, 0)),
        scratch_shapes=[pltpu.VMEM((C, W), jnp.float32)],
        compiler_params=pltpu.CompilerParams(
            dimension_semantics=("parallel", "arbitrary"),
        ),
        cost_estimate=cost,
    )(y2, gt2)

    # Single reduction over the per-batch partial rows, then unpack scalars.
    sums = jnp.sum(partials[:, 0, :], axis=0)
    abs_sum, h_tv, w_tv, c_tv = sums[0], sums[1], sums[2], sums[3]
    acos_sum = sums[4]

    loss1 = abs_sum / (B * C * H * W)
    loss2 = la1 * (acos_sum / (B * H * W) / np.pi)
    # NOTE: like the PyTorch reference, H==1 / W==1 / C==1 divide by a zero count.
    spatial_tv = 0.001 * (h_tv / (C * (H - 1) * W) + w_tv / (C * H * (W - 1))) / B
    spectral_tv = 0.001 * 2.0 * (c_tv / ((C - 1) * H * W)) / B

    # The reference HLoss2 computes loss3 (la2 * L1(cal_gradient)) but never adds
    # it to the returned loss, so the whole cal_gradient path is omitted.
    del la2
    return loss1 + loss2 + spatial_tv + spectral_tv


def _hloss2_ref(y, gt, la1, la2):
    """Pure-JAX reference mirroring the PyTorch module (for verification)."""
    y = y.astype(jnp.float32)
    gt = gt.astype(jnp.float32)
    B, C, H, W = y.shape
    esp = 1e-6

    loss1 = jnp.mean(jnp.abs(y - gt))

    inner = jnp.sum(y * gt, axis=1, keepdims=True)
    len1 = jnp.sqrt(jnp.sum(y * y, axis=1, keepdims=True))
    len2 = jnp.sqrt(jnp.sum(gt * gt, axis=1, keepdims=True))
    divisor = len1 * len2
    divisor = divisor + (divisor == 0).astype(jnp.float32) * esp
    cosA = jnp.clip(jnp.sum(inner / divisor, axis=1), -1.0 + esp, 1.0 - esp)
    sam = jnp.mean(jnp.arccos(cosA)) / jnp.pi
    loss2 = la1 * sam

    h_tv = jnp.sum((y[:, :, 1:, :] - y[:, :, :-1, :]) ** 2)
    w_tv = jnp.sum((y[:, :, :, 1:] - y[:, :, :, :-1]) ** 2)
    spatial_tv = 0.001 * (h_tv / (C * (H - 1) * W) + w_tv / (C * H * (W - 1))) / B

    c_tv = jnp.sum((y[:, 1:, :, :] - y[:, :-1, :, :]) ** 2)
    spectral_tv = 0.001 * 2.0 * (c_tv / ((C - 1) * H * W)) / B

    return loss1 + loss2 + spatial_tv + spectral_tv


if __name__ == "__main__":
    key = jax.random.PRNGKey(0)
    k1, k2 = jax.random.split(key)
    B, C, H, W = 2, 4, 16, 16
    y = jax.random.normal(k1, (B, C, H, W), dtype=jnp.float32)
    gt = jax.random.normal(k2, (B, C, H, W), dtype=jnp.float32)

    la1, la2 = 0.1, 0.1
    ref = jax.block_until_ready(_hloss2_ref(y, gt, la1, la2))

    # Default path: whole image fits, single H-tile per batch item.
    out = jax.block_until_ready(hloss2(y, gt, la1=la1, la2=la2))
    assert np.allclose(np.asarray(out), np.asarray(ref), rtol=1e-3, atol=1e-3), (
        float(out), float(ref))

    # Also exercise the H-tiled path (2 tiles per image, cross-tile row carry).
    out_tiled = jax.block_until_ready(
        hloss2(y, gt, la1=la1, la2=la2, max_rows_per_tile=8))
    assert np.allclose(np.asarray(out_tiled), np.asarray(ref), rtol=1e-3, atol=1e-3), (
        float(out_tiled), float(ref))

    print("KERNEL_OK")
</pallas_src>

<mosaic_0001>
module attributes {stable_mosaic.version = 11 : i64} {
  func.func @_hloss2_kernel(%arg0: i32, %arg1: i32, %arg2: memref<1x4x256xf32, #tpu.memory_space<vmem>>, %arg3: memref<1x4x256xf32, #tpu.memory_space<vmem>>, %arg4: memref<1x1x128xf32, #tpu.memory_space<vmem>>, %arg5: memref<4x16xf32, #tpu.memory_space<vmem>>) attributes {dimension_semantics = [#tpu.dimension_semantics<parallel>, #tpu.dimension_semantics<arbitrary>], iteration_bounds = array<i64: 2, 1>, scalar_prefetch = 0 : i64, scratch_operands = 1 : i64, tpu.core_type = #tpu.core_type<tc>, window_params = [{transform_indices = @transform_0, window_bounds = array<i64: 1, 4, 256>}, {transform_indices = @transform_1, window_bounds = array<i64: 1, 4, 256>}, {transform_indices = @transform_2, window_bounds = array<i64: 1, 1, 128>}]} {
    %c0 = arith.constant 0 : index
    %c0_0 = arith.constant 0 : index
    %c0_1 = arith.constant 0 : index
    %0 = vector.load %arg2[%c0, %c0_0, %c0_1] : memref<1x4x256xf32, #tpu.memory_space<vmem>>, vector<1x4x256xf32>
    %1 = vector.shape_cast %0 : vector<1x4x256xf32> to vector<4x256xf32>
    %c0_2 = arith.constant 0 : index
    %c0_3 = arith.constant 0 : index
    %c0_4 = arith.constant 0 : index
    %2 = vector.load %arg3[%c0_2, %c0_3, %c0_4] : memref<1x4x256xf32, #tpu.memory_space<vmem>>, vector<1x4x256xf32>
    %3 = vector.shape_cast %2 : vector<1x4x256xf32> to vector<4x256xf32>
    %4 = vector.extract_strided_slice %1 {offsets = [0, 0], sizes = [4, 16], strides = [1, 1]} : vector<4x256xf32> to vector<4x16xf32>
    %c0_i32 = arith.constant 0 : i32
    %5 = arith.cmpi eq, %arg1, %c0_i32 : i32
    %6 = arith.extui %5 : i1 to i32
    %c0_i32_5 = arith.constant 0 : i32
    %7 = arith.cmpi ne, %6, %c0_i32_5 : i32
    scf.if %7 {
      %cst_52 = arith.constant 0.000000e+00 : f32
      %166 = vector.broadcast %cst_52 : f32 to vector<1x128xf32>
      %c0_53 = arith.constant 0 : index
      %c0_54 = arith.constant 0 : index
      %c0_55 = arith.constant 0 : index
      %167 = vector.load %arg4[%c0_53, %c0_54, %c0_55] : memref<1x1x128xf32, #tpu.memory_space<vmem>>, vector<1x1x128xf32>
      %168 = vector.shape_cast %167 : vector<1x1x128xf32> to vector<1x128xf32>
      %169 = vector.shape_cast %166 : vector<1x128xf32> to vector<1x1x128xf32>
      tpu.vector_store %arg4[%c0_53, %c0_54, %c0_55], %169 {strides = array<i32>} : memref<1x1x128xf32, #tpu.memory_space<vmem>>, vector<1x1x128xf32>,
      %c0_56 = arith.constant 0 : index
      %c0_57 = arith.constant 0 : index
      %170 = vector.load %arg5[%c0_56, %c0_57] : memref<4x16xf32, #tpu.memory_space<vmem>>, vector<4x16xf32>
      tpu.vector_store %arg5[%c0_56, %c0_57], %4 {strides = array<i32>} : memref<4x16xf32, #tpu.memory_space<vmem>>, vector<4x16xf32>,
    } else {
    }
    %8 = arith.subf %1, %3 : vector<4x256xf32>
    %9 = math.absf %8 : vector<4x256xf32>
    %10 = vector.shape_cast %9 : vector<4x256xf32> to vector<1x4x256xf32>
    %cst = arith.constant dense<0.000000e+00> : vector<1xf32>
    %11 = vector.multi_reduction <add>, %10, %cst [1, 2] : vector<1x4x256xf32> to vector<1xf32>
    %12 = vector.shape_cast %11 : vector<1xf32> to vector<1x1x1xf32>
    %13 = vector.extract %12[0, 0, 0] : f32 from vector<1x1x1xf32>
    %14 = arith.mulf %1, %3 : vector<4x256xf32>
    %cst_6 = arith.constant dense<0.000000e+00> : vector<256xf32>
    %15 = vector.multi_reduction <add>, %14, %cst_6 [0] : vector<4x256xf32> to vector<256xf32>
    %16 = vector.shape_cast %15 : vector<256xf32> to vector<1x256xf32>
    %17 = arith.mulf %1, %1 : vector<4x256xf32>
    %cst_7 = arith.constant dense<0.000000e+00> : vector<256xf32>
    %18 = vector.multi_reduction <add>, %17, %cst_7 [0] : vector<4x256xf32> to vector<256xf32>
    %19 = vector.shape_cast %18 : vector<256xf32> to vector<1x256xf32>
    %20 = arith.mulf %3, %3 : vector<4x256xf32>
    %cst_8 = arith.constant dense<0.000000e+00> : vector<256xf32>
    %21 = vector.multi_reduction <add>, %20, %cst_8 [0] : vector<4x256xf32> to vector<256xf32>
    %22 = vector.shape_cast %21 : vector<256xf32> to vector<1x256xf32>
    %23 = math.sqrt %19 : vector<1x256xf32>
    %24 = math.sqrt %22 : vector<1x256xf32>
    %25 = arith.mulf %23, %24 : vector<1x256xf32>
    %cst_9 = arith.constant 0.000000e+00 : f32
    %26 = vector.broadcast %cst_9 : f32 to vector<1x256xf32>
    %27 = arith.cmpf oeq, %25, %26 : vector<1x256xf32>
    %cst_10 = arith.constant 9.99999997E-7 : f32
    %28 = vector.broadcast %cst_10 : f32 to vector<1x256xf32>
    %29 = arith.select %27, %28, %25 : vector<1x256xi1>, vector<1x256xf32>
    %30 = arith.divf %16, %29 : vector<1x256xf32>
    %cst_11 = arith.constant -0.999998986 : f32
    %cst_12 = arith.constant 0.999998986 : f32
    %31 = vector.broadcast %cst_11 : f32 to vector<1x256xf32>
    %32 = arith.maximumf %31, %30 : vector<1x256xf32>
    %33 = vector.broadcast %cst_12 : f32 to vector<1x256xf32>
    %34 = arith.minimumf %33, %32 : vector<1x256xf32>
    %35 = math.absf %34 : vector<1x256xf32>
    %cst_13 = arith.constant -0.0012624911 : f32
    %36 = vector.broadcast %cst_13 : f32 to vector<1x256xf32>
    %37 = arith.mulf %36, %35 : vector<1x256xf32>
    %cst_14 = arith.constant 6.670090e-03 : f32
    %38 = vector.broadcast %cst_14 : f32 to vector<1x256xf32>
    %39 = arith.addf %37, %38 : vector<1x256xf32>
    %40 = arith.mulf %39, %35 : vector<1x256xf32>
    %cst_15 = arith.constant 0.0170881264 : f32
    %41 = vector.broadcast %cst_15 : f32 to vector<1x256xf32>
    %42 = arith.subf %40, %41 : vector<1x256xf32>
    %43 = arith.mulf %42, %35 : vector<1x256xf32>
    %cst_16 = arith.constant 0.0308918804 : f32
    %44 = vector.broadcast %cst_16 : f32 to vector<1x256xf32>
    %45 = arith.addf %43, %44 : vector<1x256xf32>
    %46 = arith.mulf %45, %35 : vector<1x256xf32>
    %cst_17 = arith.constant 0.0501743034 : f32
    %47 = vector.broadcast %cst_17 : f32 to vector<1x256xf32>
    %48 = arith.subf %46, %47 : vector<1x256xf32>
    %49 = arith.mulf %48, %35 : vector<1x256xf32>
    %cst_18 = arith.constant 0.0889789909 : f32
    %50 = vector.broadcast %cst_18 : f32 to vector<1x256xf32>
    %51 = arith.addf %49, %50 : vector<1x256xf32>
    %52 = arith.mulf %51, %35 : vector<1x256xf32>
    %cst_19 = arith.constant 0.214598805 : f32
    %53 = vector.broadcast %cst_19 : f32 to vector<1x256xf32>
    %54 = arith.subf %52, %53 : vector<1x256xf32>
    %55 = arith.mulf %54, %35 : vector<1x256xf32>
    %cst_20 = arith.constant 1.57079625 : f32
    %56 = vector.broadcast %cst_20 : f32 to vector<1x256xf32>
    %57 = arith.addf %55, %56 : vector<1x256xf32>
    %cst_21 = arith.constant 1.000000e+00 : f32
    %58 = vector.broadcast %cst_21 : f32 to vector<1x256xf32>
    %59 = arith.subf %58, %35 : vector<1x256xf32>
    %cst_22 = arith.constant 0.000000e+00 : f32
    %60 = vector.broadcast %cst_22 : f32 to vector<1x256xf32>
    %61 = arith.maximumf %59, %60 : vector<1x256xf32>
    %62 = math.sqrt %61 : vector<1x256xf32>
    %63 = arith.mulf %62, %57 : vector<1x256xf32>
    %cst_23 = arith.constant 0.000000e+00 : f32
    %64 = vector.broadcast %cst_23 : f32 to vector<1x256xf32>
    %65 = arith.cmpf oge, %34, %64 : vector<1x256xf32>
    %cst_24 = arith.constant 3.14159274 : f32
    %66 = vector.broadcast %cst_24 : f32 to vector<1x256xf32>
    %67 = arith.subf %66, %63 : vector<1x256xf32>
    %68 = arith.select %65, %63, %67 : vector<1x256xi1>, vector<1x256xf32>
    %69 = vector.shape_cast %68 : vector<1x256xf32> to vector<1x1x256xf32>
    %cst_25 = arith.constant dense<0.000000e+00> : vector<1xf32>
    %70 = vector.multi_reduction <add>, %69, %cst_25 [1, 2] : vector<1x1x256xf32> to vector<1xf32>
    %71 = vector.shape_cast %70 : vector<1xf32> to vector<1x1x1xf32>
    %72 = vector.extract %71[0, 0, 0] : f32 from vector<1x1x1xf32>
    %c0_26 = arith.constant 0 : index
    %c0_27 = arith.constant 0 : index
    %73 = vector.load %arg5[%c0_26, %c0_27] : memref<4x16xf32, #tpu.memory_space<vmem>>, vector<4x16xf32>
    %74 = arith.subf %4, %73 : vector<4x16xf32>
    %75 = arith.mulf %74, %74 : vector<4x16xf32>
    %76 = vector.shape_cast %75 : vector<4x16xf32> to vector<1x4x16xf32>
    %cst_28 = arith.constant dense<0.000000e+00> : vector<1xf32>
    %77 = vector.multi_reduction <add>, %76, %cst_28 [1, 2] : vector<1x4x16xf32> to vector<1xf32>
    %78 = vector.shape_cast %77 : vector<1xf32> to vector<1x1x1xf32>
    %79 = vector.extract %78[0, 0, 0] : f32 from vector<1x1x1xf32>
    %80 = vector.extract_strided_slice %1 {offsets = [0, 16], sizes = [4, 240], strides = [1, 1]} : vector<4x256xf32> to vector<4x240xf32>
    %81 = vector.extract_strided_slice %1 {offsets = [0, 0], sizes = [4, 240], strides = [1, 1]} : vector<4x256xf32> to vector<4x240xf32>
    %82 = arith.subf %80, %81 : vector<4x240xf32>
    %83 = arith.mulf %82, %82 : vector<4x240xf32>
    %84 = vector.shape_cast %83 : vector<4x240xf32> to vector<1x4x240xf32>
    %cst_29 = arith.constant dense<0.000000e+00> : vector<1xf32>
    %85 = vector.multi_reduction <add>, %84, %cst_29 [1, 2] : vector<1x4x240xf32> to vector<1xf32>
    %86 = vector.shape_cast %85 : vector<1xf32> to vector<1x1x1xf32>
    %87 = vector.extract %86[0, 0, 0] : f32 from vector<1x1x1xf32>
    %88 = arith.addf %79, %87 : f32
    %89 = vector.extract_strided_slice %1 {offsets = [0, 240], sizes = [4, 16], strides = [1, 1]} : vector<4x256xf32> to vector<4x16xf32>
    %c0_30 = arith.constant 0 : index
    %c0_31 = arith.constant 0 : index
    %90 = vector.load %arg5[%c0_30, %c0_31] : memref<4x16xf32, #tpu.memory_space<vmem>>, vector<4x16xf32>
    tpu.vector_store %arg5[%c0_30, %c0_31], %89 {strides = array<i32>} : memref<4x16xf32, #tpu.memory_space<vmem>>, vector<4x16xf32>,
    %91 = vector.extract_strided_slice %1 {offsets = [0, 1], sizes = [4, 255], strides = [1, 1]} : vector<4x256xf32> to vector<4x255xf32>
    %92 = vector.extract_strided_slice %1 {offsets = [0, 0], sizes = [4, 255], strides = [1, 1]} : vector<4x256xf32> to vector<4x255xf32>
    %93 = arith.subf %91, %92 : vector<4x255xf32>
    %94 = tpu.iota {dimensions = array<i32: 1>} : vector<1x255xi32>
    %c16_i32 = arith.constant 16 : i32
    %c0_i32_32 = arith.constant 0 : i32
    %95 = arith.cmpi eq, %c16_i32, %c0_i32_32 : i32
    %c1_i32 = arith.constant 1 : i32
    %96 = arith.select %95, %c1_i32, %c16_i32 : i32
    %97 = vector.broadcast %96 : i32 to vector<1x255xi32>
    %98 = arith.remsi %94, %97 : vector<1x255xi32>
    %c0_i32_33 = arith.constant 0 : i32
    %99 = vector.broadcast %c0_i32_33 : i32 to vector<1x255xi32>
    %100 = arith.cmpi ne, %98, %99 : vector<1x255xi32>
    %c0_i32_34 = arith.constant 0 : i32
    %101 = vector.broadcast %c0_i32_34 : i32 to vector<1x255xi32>
    %102 = arith.cmpi slt, %98, %101 : vector<1x255xi32>
    %c0_i32_35 = arith.constant 0 : i32
    %103 = arith.cmpi slt, %96, %c0_i32_35 : i32
    %104 = vector.broadcast %103 : i1 to vector<1x255xi1>
    %105 = vector.broadcast %104 : vector<1x255xi1> to vector<1x255xi1>
    %106 = arith.xori %102, %105 : vector<1x255xi1>
    %107 = arith.andi %106, %100 : vector<1x255xi1>
    %108 = vector.broadcast %96 : i32 to vector<1x255xi32>
    %109 = arith.addi %98, %108 : vector<1x255xi32>
    %110 = arith.select %107, %109, %98 : vector<1x255xi1>, vector<1x255xi32>
    %c15_i32 = arith.constant 15 : i32
    %111 = vector.broadcast %c15_i32 : i32 to vector<1x255xi32>
    %112 = arith.cmpi ne, %110, %111 : vector<1x255xi32>
    %cst_36 = arith.constant 0.000000e+00 : f32
    %113 = vector.shape_cast %112 : vector<1x255xi1> to vector<1x255xi1>
    %114 = vector.broadcast %113 : vector<1x255xi1> to vector<4x255xi1>
    %115 = vector.broadcast %cst_36 : f32 to vector<4x255xf32>
    %116 = arith.select %114, %93, %115 : vector<4x255xi1>, vector<4x255xf32>
    %117 = arith.mulf %116, %116 : vector<4x255xf32>
    %118 = vector.shape_cast %117 : vector<4x255xf32> to vector<1x4x255xf32>
    %cst_37 = arith.constant dense<0.000000e+00> : vector<1xf32>
    %119 = vector.multi_reduction <add>, %118, %cst_37 [1, 2] : vector<1x4x255xf32> to vector<1xf32>
    %120 = vector.shape_cast %119 : vector<1xf32> to vector<1x1x1xf32>
    %121 = vector.extract %120[0, 0, 0] : f32 from vector<1x1x1xf32>
    %122 = vector.extract_strided_slice %1 {offsets = [1, 0], sizes = [3, 256], strides = [1, 1]} : vector<4x256xf32> to vector<3x256xf32>
    %123 = vector.extract_strided_slice %1 {offsets = [0, 0], sizes = [3, 256], strides = [1, 1]} : vector<4x256xf32> to vector<3x256xf32>
    %124 = arith.subf %122, %123 : vector<3x256xf32>
    %125 = arith.mulf %124, %124 : vector<3x256xf32>
    %126 = vector.shape_cast %125 : vector<3x256xf32> to vector<1x3x256xf32>
    %cst_38 = arith.constant dense<0.000000e+00> : vector<1xf32>
    %127 = vector.multi_reduction <add>, %126, %cst_38 [1, 2] : vector<1x3x256xf32> to vector<1xf32>
    %128 = vector.shape_cast %127 : vector<1xf32> to vector<1x1x1xf32>
    %129 = vector.extract %128[0, 0, 0] : f32 from vector<1x1x1xf32>
    %130 = tpu.iota {dimensions = array<i32: 1>} : vector<1x128xi32>
    %c0_i32_39 = arith.constant 0 : i32
    %131 = vector.broadcast %c0_i32_39 : i32 to vector<1x128xi32>
    %132 = arith.cmpi eq, %130, %131 : vector<1x128xi32>
    %cst_40 = arith.constant 0.000000e+00 : f32
    %133 = vector.broadcast %13 : f32 to vector<1x128xf32>
    %134 = vector.broadcast %cst_40 : f32 to vector<1x128xf32>
    %135 = arith.select %132, %133, %134 : vector<1x128xi1>, vector<1x128xf32>
    %c1_i32_41 = arith.constant 1 : i32
    %136 = vector.broadcast %c1_i32_41 : i32 to vector<1x128xi32>
    %137 = arith.cmpi eq, %130, %136 : vector<1x128xi32>
    %cst_42 = arith.constant 0.000000e+00 : f32
    %138 = vector.broadcast %88 : f32 to vector<1x128xf32>
    %139 = vector.broadcast %cst_42 : f32 to vector<1x128xf32>
    %140 = arith.select %137, %138, %139 : vector<1x128xi1>, vector<1x128xf32>
    %141 = arith.addf %135, %140 : vector<1x128xf32>
    %c2_i32 = arith.constant 2 : i32
    %142 = vector.broadcast %c2_i32 : i32 to vector<1x128xi32>
    %143 = arith.cmpi eq, %130, %142 : vector<1x128xi32>
    %cst_43 = arith.constant 0.000000e+00 : f32
    %144 = vector.broadcast %121 : f32 to vector<1x128xf32>
    %145 = vector.broadcast %cst_43 : f32 to vector<1x128xf32>
    %146 = arith.select %143, %144, %145 : vector<1x128xi1>, vector<1x128xf32>
    %147 = arith.addf %141, %146 : vector<1x128xf32>
    %c3_i32 = arith.constant 3 : i32
    %148 = vector.broadcast %c3_i32 : i32 to vector<1x128xi32>
    %149 = arith.cmpi eq, %130, %148 : vector<1x128xi32>
    %cst_44 = arith.constant 0.000000e+00 : f32
    %150 = vector.broadcast %129 : f32 to vector<1x128xf32>
    %151 = vector.broadcast %cst_44 : f32 to vector<1x128xf32>
    %152 = arith.select %149, %150, %151 : vector<1x128xi1>, vector<1x128xf32>
    %153 = arith.addf %147, %152 : vector<1x128xf32>
    %c4_i32 = arith.constant 4 : i32
    %154 = vector.broadcast %c4_i32 : i32 to vector<1x128xi32>
    %155 = arith.cmpi eq, %130, %154 : vector<1x128xi32>
    %cst_45 = arith.constant 0.000000e+00 : f32
    %156 = vector.broadcast %72 : f32 to vector<1x128xf32>
    %157 = vector.broadcast %cst_45 : f32 to vector<1x128xf32>
    %158 = arith.select %155, %156, %157 : vector<1x128xi1>, vector<1x128xf32>
    %159 = arith.addf %153, %158 : vector<1x128xf32>
    %c0_46 = arith.constant 0 : index
    %c0_47 = arith.constant 0 : index
    %c0_48 = arith.constant 0 : index
    %160 = vector.load %arg4[%c0_46, %c0_47, %c0_48] : memref<1x1x128xf32, #tpu.memory_space<vmem>>, vector<1x1x128xf32>
    %161 = vector.shape_cast %160 : vector<1x1x128xf32> to vector<1x128xf32>
    %162 = arith.addf %161, %159 : vector<1x128xf32>
    %c0_49 = arith.constant 0 : index
    %c0_50 = arith.constant 0 : index
    %c0_51 = arith.constant 0 : index
    %163 = vector.load %arg4[%c0_49, %c0_50, %c0_51] : memref<1x1x128xf32, #tpu.memory_space<vmem>>, vector<1x1x128xf32>
    %164 = vector.shape_cast %163 : vector<1x1x128xf32> to vector<1x128xf32>
    %165 = vector.shape_cast %162 : vector<1x128xf32> to vector<1x1x128xf32>
    tpu.vector_store %arg4[%c0_49, %c0_50, %c0_51], %165 {strides = array<i32>} : memref<1x1x128xf32, #tpu.memory_space<vmem>>, vector<1x1x128xf32>,
    return
  }
  func.func @transform_0(%arg0: i32, %arg1: i32) -> (i32, i32, i32) {
    %c0_i32 = arith.constant 0 : i32
    %c0_i32_0 = arith.constant 0 : i32
    return %arg0, %c0_i32, %arg1 : i32, i32, i32
  }
  func.func @transform_1(%arg0: i32, %arg1: i32) -> (i32, i32, i32) {
    %c0_i32 = arith.constant 0 : i32
    %c0_i32_0 = arith.constant 0 : i32
    return %arg0, %c0_i32, %arg1 : i32, i32, i32
  }
  func.func @transform_2(%arg0: i32, %arg1: i32) -> (i32, i32, i32) {
    %c0_i32 = arith.constant 0 : i32
    %c0_i32_0 = arith.constant 0 : i32
    %c0_i32_1 = arith.constant 0 : i32
    return %arg0, %c0_i32, %c0_i32_0 : i32, i32, i32
  }
}

</mosaic_0001>

<llo_original>
// kernel: tpu_custom_call.1
$region0: #{tpu_custom_call.1}
  #allocation0 [shape = 'u32[]', space=smem, size = 0x4, offset = 0x4, fixed_abs, tag = 'smem constant byte address 0x4 - core index']
  #allocation1 [shape = 'u32[144,128]{1,0:T(1,128)}', space=vmem, size = 0x12000, scoped, tag = 'internal scratch']
  #allocation2 [shape = 'f32[4,16]{1,0:T(4,128)}', space=vmem, size = 0x800, scoped, tag = 'scratch operand']
  %s0 = inlined_call_operand.hbm [shape: f32[2,4,256], index: 0, kind: input, shape index: {}]
  %s1 = inlined_call_operand.hbm [shape: f32[2,4,256], index: 1, kind: input, shape index: {}]
  %s2 = inlined_call_operand.hbm [shape: f32[2,1,128], index: 2, kind: output, shape index: {}]
  %s3 = sld [smem:[#allocation0]]
  $region53: #{tpu_custom_call.1} parent=0
    _
  %s5 = ssub.s32 1, %s3
  %s6 = scalar_select 0, %s5, %s3
  $region1: #{tpu_custom_call.1} parent=0
    #allocation3 [shape = 'u8[8192]{0}', space=vmem, size = 0x2000, scoped, tag = 'input window, operand 0']
    #allocation4 [shape = 's32[2]{0}', space=sflag, size = 0x8, scoped, tag = 'scoped memory for tpu_custom_call.1']
    #allocation5 [shape = 's32[2]{0}', space=sflag, size = 0x8, scoped, tag = 'scoped memory for tpu_custom_call.1']
    #allocation6 [shape = 'u8[8192]{0}', space=vmem, size = 0x2000, scoped, tag = 'input window, operand 1']
    #allocation7 [shape = 's32[2]{0}', space=sflag, size = 0x8, scoped, tag = 'scoped memory for tpu_custom_call.1']
    #allocation8 [shape = 'u8[1024]{0}', space=vmem, size = 0x400, scoped, tag = 'output window, operand 0']
    %7 = vsyncpa [#allocation4], 0
    %s8 = scalar_lea.sflag [#allocation4], 1
    %9 = vsyncpa %s8, 0
    %10 = vsyncpa [#allocation7], 0
    %s11 = scalar_lea.sflag [#allocation7], 1
    %12 = vsyncpa %s11, 0
    %13 = vsyncpa [#allocation5], 0
    %s14 = scalar_lea.sflag [#allocation5], 1
    %15 = vsyncpa %s14, 0
    loop: start=0, step=1, limit=4
    $region2: #{tpu_custom_call.1} parent=1 // loop_pre_header
      _
    $region3: #{tpu_custom_call.1} parent=1 // loop_header
      %s17 = sphi 0, %s21
      %p18 = scmp.ge.s32.totalorder %s17, 4
      %s24 = sphi 0, %s36
      %s25 = sphi 0, %s32
      %s26 = sphi 0, %s24
      %s27 = sphi 0, %s25
      %s28 = sphi 0, %s26
      %s29 = sphi 0, %s27
      %s41 = sphi 0, %s43
      %s44 = sphi 0, %s41
      %s45 = sphi 0, %s44
      %s61 = sphi 0, %s45
      %s69 = sphi 0, %s71
      %s72 = sphi 0, %s69
      %s73 = sphi 0, %s72
      %s89 = sphi 0, %s73
      %s95 = sphi 0, %s97
      %s98 = sphi 0, %s95
      %s99 = sphi 0, %s98
      %s115 = sphi 0, %s99
    $region4: #{tpu_custom_call.1} parent=1 // loop_header_branch
      %20 = sbr.rel (%p18) target = $region8
    $region5: #{tpu_custom_call.1} parent=1 // loop_body
      %s22 = ssub.s32 %s17, 1
      %s23 = ssub.s32 %s17, 2
      %s30 = sadd.s32 1, %s25
      %p31 = scmp.ge.s32.totalorder %s30, 1
      %s32 = scalar_select %p31, 0, %s30
      %s33 = sadd.s32 1, %s24
      %s34 = scalar_select %p31, %s33, %s24
      %p35 = scmp.ge.s32.totalorder %s34, 2
      %s36 = scalar_select %p35, 0, %s34
      %s37 = ssub.s32 %s24, %s36
      %s38 = ssub.s32 %s25, %s32
      %s39 = sor.u32 %s37, %s38
      %p40 = scmp.eq.s32.totalorder %s39, 0
      %s42 = sadd.s32 %s41, 1
      %s43 = scalar_select %p40, %s41, %s42
      %p46 = pneg %p40
      %p47 = scmp.eq.s32.totalorder %s17, 1
      %p48 = por %p46, %p47
      %p49 = scmp.ne.s32.totalorder %s41, %s44
      %p50 = scmp.eq.s32.totalorder %s17, 0
      %p51 = por %p49, %p50
      %p52 = scmp.ne.s32.totalorder %s41, %s44
      %p53 = scmp.eq.s32.totalorder %s22, 1
      %p54 = por %p52, %p53
      %p55 = scmp.ne.s32.totalorder %s44, %s45
      %p56 = scmp.eq.s32.totalorder %s22, 0
      %p57 = por %p55, %p56
      %p58 = scmp.ne.s32.totalorder %s44, %s45
      %p59 = scmp.eq.s32.totalorder %s23, 1
      %p60 = por %p58, %p59
      %p62 = scmp.ne.s32.totalorder %s45, %s61
      %p63 = scmp.eq.s32.totalorder %s23, 0
      %p64 = por %p62, %p63
      %s65 = ssub.s32 %s24, %s36
      %s66 = ssub.s32 %s25, %s32
      %s67 = sor.u32 %s65, %s66
      %p68 = scmp.eq.s32.totalorder %s67, 0
      %s70 = sadd.s32 %s69, 1
      %s71 = scalar_select %p68, %s69, %s70
      %p74 = pneg %p68
      %p75 = scmp.eq.s32.totalorder %s17, 1
      %p76 = por %p74, %p75
      %p77 = scmp.ne.s32.totalorder %s69, %s72
      %p78 = scmp.eq.s32.totalorder %s17, 0
      %p79 = por %p77, %p78
      %p80 = scmp.ne.s32.totalorder %s69, %s72
      %p81 = scmp.eq.s32.totalorder %s22, 1
      %p82 = por %p80, %p81
      %p83 = scmp.ne.s32.totalorder %s72, %s73
      %p84 = scmp.eq.s32.totalorder %s22, 0
      %p85 = por %p83, %p84
      %p86 = scmp.ne.s32.totalorder %s72, %s73
      %p87 = scmp.eq.s32.totalorder %s23, 1
      %p88 = por %p86, %p87
      %p90 = scmp.ne.s32.totalorder %s73, %s89
      %p91 = scmp.eq.s32.totalorder %s23, 0
      %p92 = por %p90, %p91
      %s93 = ssub.s32 %s24, %s36
      %p94 = scmp.eq.s32.totalorder %s93, 0
      %s96 = sadd.s32 %s95, 1
      %s97 = scalar_select %p94, %s95, %s96
      %p100 = pneg %p94
      %p101 = scmp.eq.s32.totalorder %s17, 1
      %p102 = por %p100, %p101
      %p103 = scmp.ne.s32.totalorder %s95, %s98
      %p104 = scmp.eq.s32.totalorder %s17, 0
      %p105 = por %p103, %p104
      %p106 = scmp.ne.s32.totalorder %s95, %s98
      %p107 = scmp.eq.s32.totalorder %s22, 1
      %p108 = por %p106, %p107
      %p109 = scmp.ne.s32.totalorder %s98, %s99
      %p110 = scmp.eq.s32.totalorder %s22, 0
      %p111 = por %p109, %p110
      %p112 = scmp.ne.s32.totalorder %s98, %s99
      %p113 = scmp.eq.s32.totalorder %s23, 1
      %p114 = por %p112, %p113
      %p116 = scmp.ne.s32.totalorder %s99, %s115
      %p117 = scmp.eq.s32.totalorder %s23, 0
      %p118 = por %p116, %p117
      %p119 = scmp.le.s32.totalorder 1, %s17
      %p120 = scmp.lt.s32.totalorder %s17, 3
      %p121 = pnand %p119, %p120
      %p122 = pneg %p121
      // Predicated region
      $region9: #{tpu_custom_call.1} parent=5 // pred_check
        _
      $region10: #{tpu_custom_call.1} parent=5 // pred_check_branch
        %124 = sbr.rel (%p121) target = $region12
      $region11: #{tpu_custom_call.1} parent=5 // pred_region
        %s125 = ssub.s32 %s17, 1
      $region12: #{tpu_custom_call.1} parent=5 // pred_fallthru
        _
      %p126 = scmp.lt.s32.totalorder %s17, 2
      // Predicated region
      $region13: #{tpu_custom_call.1} parent=5 // pred_check
        %p127 = pneg %p126
      $region14: #{tpu_custom_call.1} parent=5 // pred_check_branch
        %129 = sbr.rel (%p127) target = $region16
      $region15: #{tpu_custom_call.1} parent=5 // pred_region
        // Predicated region
        $region17: #{tpu_custom_call.1} parent=15 // pred_check
          %p130 = pneg %p51
        $region18: #{tpu_custom_call.1} parent=15 // pred_check_branch
          %132 = sbr.rel (%p130) target = $region20
        $region19: #{tpu_custom_call.1} parent=15 // pred_region
          %s133 = sand.u32 %s41, 1
          %s134 = scalar_lea.sflag [#allocation4], %s133
          %s135 = sand.u32 %s41, 1
          %s136 = smul.addr %s135, 8
          %s137 = scalar_lea.vmem [#allocation3], %s136
          %s138 = smul.u32 2, %s25
          %s140 = ssub.s32 128, 128
          %141 = vsyncadd %s134, %s140
          %s142 = smul.addr %s24, 2
          %s143 = sadd.s32 %s138, %s142
          %s144 = smul.addr %s143, 64
          %s145 = scalar_lea.hbm %s0, %s144
          %s147 = sshll.u32 %s137, 4
          %s148 = int_to_ptr.vmem [resolvable:$true] %s147
          %150 = dma.hbm_to_vmem [thread:$0]  %s145, 128, %s148, %s134
        $region20: #{tpu_custom_call.1} parent=15 // pred_fallthru
          _
        // Predicated region
        $region21: #{tpu_custom_call.1} parent=15 // pred_check
          %p151 = pneg %p79
        $region22: #{tpu_custom_call.1} parent=15 // pred_check_branch
          %153 = sbr.rel (%p151) target = $region24
        $region23: #{tpu_custom_call.1} parent=15 // pred_region
          %s154 = sand.u32 %s69, 1
          %s155 = scalar_lea.sflag [#allocation7], %s154
          %s156 = sand.u32 %s69, 1
          %s157 = smul.addr %s156, 8
          %s158 = scalar_lea.vmem [#allocation6], %s157
          %s159 = smul.u32 2, %s25
          %s161 = ssub.s32 128, 128
          %162 = vsyncadd %s155, %s161
          %s163 = smul.addr %s24, 2
          %s164 = sadd.s32 %s159, %s163
          %s165 = smul.addr %s164, 64
          %s166 = scalar_lea.hbm %s1, %s165
          %s168 = sshll.u32 %s158, 4
          %s169 = int_to_ptr.vmem [resolvable:$true] %s168
          %171 = dma.hbm_to_vmem [thread:$0]  %s166, 128, %s169, %s155
        $region24: #{tpu_custom_call.1} parent=15 // pred_fallthru
          _
      $region16: #{tpu_custom_call.1} parent=5 // pred_fallthru
        _
      %p172 = scmp.le.s32.totalorder 1, %s17
      %p173 = scmp.lt.s32.totalorder %s17, 3
      %p174 = pnand %p172, %p173
      %p175 = pneg %p174
      // Predicated region
      $region25: #{tpu_custom_call.1} parent=5 // pred_check
        _
      $region26: #{tpu_custom_call.1} parent=5 // pred_check_branch
        %177 = sbr.rel (%p174) target = $region28
      $region27: #{tpu_custom_call.1} parent=5 // pred_region
        %s178 = ssub.s32 %s17, 1
        %s179 = sand.u32 %s44, 1
        %s180 = scalar_lea.sflag [#allocation4], %s179
        %s181 = sand.u32 %s44, 1
        %s182 = smul.addr %s181, 8
        %s183 = scalar_lea.vmem [#allocation3], %s182
        // Predicated region
        $region29: #{tpu_custom_call.1} parent=27 // pred_check
          %p184 = pneg %p57
        $region30: #{tpu_custom_call.1} parent=27 // pred_check_branch
          %186 = sbr.rel (%p184) target = $region32
        $region31: #{tpu_custom_call.1} parent=27 // pred_region
          %187 = dma.done %s180, 128
        $region32: #{tpu_custom_call.1} parent=27 // pred_fallthru
          _
        %s188 = sand.u32 %s72, 1
        %s189 = scalar_lea.sflag [#allocation7], %s188
        %s190 = sand.u32 %s72, 1
        %s191 = smul.addr %s190, 8
        %s192 = scalar_lea.vmem [#allocation6], %s191
        // Predicated region
        $region33: #{tpu_custom_call.1} parent=27 // pred_check
          %p193 = pneg %p85
        $region34: #{tpu_custom_call.1} parent=27 // pred_check_branch
          %195 = sbr.rel (%p193) target = $region36
        $region35: #{tpu_custom_call.1} parent=27 // pred_region
          %196 = dma.done %s189, 128
        $region36: #{tpu_custom_call.1} parent=27 // pred_fallthru
          _
        %s197 = sand.u32 %s44, 1
        %s198 = scalar_lea.sflag [#allocation4], %s197
        %s199 = sand.u32 %s44, 1
        %s200 = smul.addr %s199, 8
        %s201 = scalar_lea.vmem [#allocation3], %s200
        %p202 = pneg %p57
        %p203 = pneg %p54
        %s204 = sand.u32 %s72, 1
        %s205 = scalar_lea.sflag [#allocation7], %s204
        %s206 = sand.u32 %s72, 1
        %s207 = smul.addr %s206, 8
        %s208 = scalar_lea.vmem [#allocation6], %s207
        %p209 = pneg %p85
        %p210 = pneg %p82
        %p211 = pneg %p111
        %p212 = pneg %p108
        %s213 = sand.u32 %s98, 1
        %s214 = scalar_lea.sflag [#allocation5], %s213
        %s215 = sand.u32 %s98, 1
        %s216 = scalar_lea.vmem [#allocation8], %s215
        %s217 = smul.u32 2, %s27
        %s218 = smul.u32 2, %s27
        %v219 = vld [vmem:[%s183] sm:$0xff]
        %v220 = vld [vmem:[%s192] sm:$0xff]
        %p221 = scmp.eq.s32.totalorder %s27, 0
        // Predicated region
        $region37: #{tpu_custom_call.1} parent=27 // pred_check
          %p222 = pneg %p221
        $region38: #{tpu_custom_call.1} parent=27 // pred_check_branch
          %224 = sbr.rel (%p222) target = $region40
        $region39: #{tpu_custom_call.1} parent=27 // pred_region
          %225 = vst [vmem:[%s216] sm:$0x1] 0.0
          %vm226 = vcmask 125952
          %227 = vst.msk [vmem:[#allocation2] sm:$0xf] %vm226, %v219
        $region40: #{tpu_custom_call.1} parent=27 // pred_fallthru
          _
        %v228 = vsub.f32 %v219, %v220
        %v229 = vand.u32 2147483647, %v228
        %v231 = vcombine.high %v229, %v229
        %vm233 = vcmask 1043456
        %v234 = vsel %vm233, %v229, 0.0
        %v235 = vsel %vm233, %v231, 0.0
        %v236 = vadd.f32 %v234, %v235
        %237 = vadd.xlane.f32.xlu0 %v236
        %v238 = vpop.xlane.xlu0 %237
        %v239 = vrot.slane %v238, 4
        %v240 = vadd.f32 %v238, %v239
        %v241 = vrot.slane %v240, 2
        %v242 = vadd.f32 %v240, %v241
        %v243 = vrot.slane %v242, 1
        %v244 = vadd.f32 %v242, %v243
        %s245 = vtos %v244
        %v246 = vmul.f32 %v219, %v220
        %v248 = vcombine.high %v246, %v246
        %v250 = vsel %vm233, %v246, 0.0
        %v251 = vrot.slane %v250, 4
        %v252 = vadd.f32 %v250, %v251
        %v253 = vrot.slane %v252, 2
        %v254 = vadd.f32 %v252, %v253
        %v255 = vrot.slane %v254, 1
        %v256 = vadd.f32 %v254, %v255
        %v257 = vsel %vm233, %v248, 0.0
        %v258 = vrot.slane %v257, 4
        %v259 = vadd.f32 %v257, %v258
        %v260 = vrot.slane %v259, 2
        %v261 = vadd.f32 %v259, %v260
        %v262 = vrot.slane %v261, 1
        %v263 = vadd.f32 %v261, %v262
        %v264 = vmul.f32 %v219, %v219
        %v266 = vcombine.high %v264, %v264
        %v268 = vsel %vm233, %v264, 0.0
        %v269 = vrot.slane %v268, 4
        %v270 = vadd.f32 %v268, %v269
        %v271 = vrot.slane %v270, 2
        %v272 = vadd.f32 %v270, %v271
        %v273 = vrot.slane %v272, 1
        %v274 = vadd.f32 %v272, %v273
        %v275 = vsel %vm233, %v266, 0.0
        %v276 = vrot.slane %v275, 4
        %v277 = vadd.f32 %v275, %v276
        %v278 = vrot.slane %v277, 2
        %v279 = vadd.f32 %v277, %v278
        %v280 = vrot.slane %v279, 1
        %v281 = vadd.f32 %v279, %v280
        %v282 = vmul.f32 %v220, %v220
        %v284 = vcombine.high %v282, %v282
        %v286 = vsel %vm233, %v282, 0.0
        %v287 = vrot.slane %v286, 4
        %v288 = vadd.f32 %v286, %v287
        %v289 = vrot.slane %v288, 2
        %v290 = vadd.f32 %v288, %v289
        %v291 = vrot.slane %v290, 1
        %v292 = vadd.f32 %v290, %v291
        %v293 = vsel %vm233, %v284, 0.0
        %v294 = vrot.slane %v293, 4
        %v295 = vadd.f32 %v293, %v294
        %v296 = vrot.slane %v295, 2
        %v297 = vadd.f32 %v295, %v296
        %v298 = vrot.slane %v297, 1
        %v299 = vadd.f32 %v297, %v298
        %v300 = vrsqrt.pop %v274
        %v301 = vmul.f32 %v274, %v300
        %vm302 = vcmp.eq.f32.partialorder %v274, inf
        %v303 = vsel %vm302, %v274, %v301
        %vm304 = vcmp.eq.f32.partialorder %v274, 0.0
        %v305 = vand.u32 %v274, 2147483648
        %v306 = vsel %vm304, %v305, %v303
        %v307 = vrsqrt.pop %v281
        %v308 = vmul.f32 %v281, %v307
        %vm309 = vcmp.eq.f32.partialorder %v281, inf
        %v310 = vsel %vm309, %v281, %v308
        %vm311 = vcmp.eq.f32.partialorder %v281, 0.0
        %v312 = vand.u32 %v281, 2147483648
        %v313 = vsel %vm311, %v312, %v310
        %v314 = vrsqrt.pop %v292
        %v315 = vmul.f32 %v292, %v314
        %vm316 = vcmp.eq.f32.partialorder %v292, inf
        %v317 = vsel %vm316, %v292, %v315
        %vm318 = vcmp.eq.f32.partialorder %v292, 0.0
        %v319 = vand.u32 %v292, 2147483648
        %v320 = vsel %vm318, %v319, %v317
        %v321 = vrsqrt.pop %v299
        %v322 = vmul.f32 %v299, %v321
        %vm323 = vcmp.eq.f32.partialorder %v299, inf
        %v324 = vsel %vm323, %v299, %v322
        %vm325 = vcmp.eq.f32.partialorder %v299, 0.0
        %v326 = vand.u32 %v299, 2147483648
        %v327 = vsel %vm325, %v326, %v324
        %v328 = vmul.f32 %v306, %v320
        %v329 = vmul.f32 %v313, %v327
        %vm330 = vcmp.eq.f32.partialorder %v328, 0.0
        %vm331 = vcmp.eq.f32.partialorder %v329, 0.0
        %v332 = vsel %vm330, 1e-06, %v328
        %v333 = vsel %vm331, 1e-06, %v329
        %v334 = vrcp.pop %v332
        %v335 = vmul.f32 %v256, %v334
        %v336 = vrcp.pop %v333
        %v337 = vmul.f32 %v263, %v336
        %v338 = vmax.f32 %v335, -0.999999
        %v339 = vmax.f32 %v337, -0.999999
        %v340 = vmin.f32 %v338, 0.999999
        %v341 = vmin.f32 %v339, 0.999999
        %v342 = vand.u32 2147483647, %v340
        %v343 = vand.u32 2147483647, %v341
        %v344 = vmul.f32 %v342, -0.0012624911
        %v345 = vmul.f32 %v343, -0.0012624911
        %v346 = vadd.f32 %v344, 0.00667009
        %v347 = vadd.f32 %v345, 0.00667009
        %v348 = vmul.f32 %v346, %v342
        %v349 = vmul.f32 %v347, %v343
        %v350 = vsub.f32 %v348, 0.017088126
        %v351 = vsub.f32 %v349, 0.017088126
        %v352 = vmul.f32 %v350, %v342
        %v353 = vmul.f32 %v351, %v343
        %v354 = vadd.f32 %v352, 0.03089188
        %v355 = vadd.f32 %v353, 0.03089188
        %v356 = vmul.f32 %v354, %v342
        %v357 = vmul.f32 %v355, %v343
        %v358 = vsub.f32 %v356, 0.050174303
        %v359 = vsub.f32 %v357, 0.050174303
        %v360 = vmul.f32 %v358, %v342
        %v361 = vmul.f32 %v359, %v343
        %v362 = vadd.f32 %v360, 0.08897899
        %v363 = vadd.f32 %v361, 0.08897899
        %v364 = vmul.f32 %v362, %v342
        %v365 = vmul.f32 %v363, %v343
        %v366 = vsub.f32 %v364, 0.2145988
        %v367 = vsub.f32 %v365, 0.2145988
        %v368 = vmul.f32 %v366, %v342
        %v369 = vmul.f32 %v367, %v343
        %v370 = vadd.f32 %v368, 1.5707963
        %v371 = vadd.f32 %v369, 1.5707963
        %v372 = vsub.f32 1.0, %v342
        %v373 = vsub.f32 1.0, %v343
        %v374 = vmax.f32 %v372, 0.0
        %v375 = vmax.f32 %v373, 0.0
        %v376 = vrsqrt.pop %v374
        %v377 = vmul.f32 %v374, %v376
        %vm378 = vcmp.eq.f32.partialorder %v374, inf
        %v379 = vsel %vm378, %v374, %v377
        %vm380 = vcmp.eq.f32.partialorder %v374, 0.0
        %v381 = vand.u32 %v374, 2147483648
        %v382 = vsel %vm380, %v381, %v379
        %v383 = vrsqrt.pop %v375
        %v384 = vmul.f32 %v375, %v383
        %vm385 = vcmp.eq.f32.partialorder %v375, inf
        %v386 = vsel %vm385, %v375, %v384
        %vm387 = vcmp.eq.f32.partialorder %v375, 0.0
        %v388 = vand.u32 %v375, 2147483648
        %v389 = vsel %vm387, %v388, %v386
        %v390 = vmul.f32 %v382, %v370
        %v391 = vmul.f32 %v389, %v371
        %vm392 = vcmp.ge.f32.partialorder %v340, 0.0
        %vm393 = vcmp.ge.f32.partialorder %v341, 0.0
        %v394 = vsub.f32 3.1415927, %v390
        %v395 = vsub.f32 3.1415927, %v391
        %v396 = vsel %vm392, %v390, %v394
        %v397 = vsel %vm393, %v391, %v395
        %vm398 = vcmask 1040384
        %v399 = vsel %vm398, %v396, 0.0
        %v400 = vsel %vm398, %v397, 0.0
        %v401 = vadd.f32 %v399, %v400
        %402 = vadd.xlane.f32.xlu0 %v401
        %v403 = vpop.xlane.xlu0 %402
        %v404 = vrot.slane %v403, 4
        %v405 = vadd.f32 %v403, %v404
        %v406 = vrot.slane %v405, 2
        %v407 = vadd.f32 %v405, %v406
        %v408 = vrot.slane %v407, 1
        %v409 = vadd.f32 %v407, %v408
        %s410 = vtos %v409
        %v411 = vld [vmem:[#allocation2] sm:$0xf]
        %v412 = vsub.f32 %v219, %v411
        %v413 = vmul.f32 %v412, %v412
        %vm414 = vcmask 125952
        %v415 = vsel %vm414, %v413, 0.0
        %416 = vadd.xlane.f32.xlu0 %v415
        %v417 = vpop.xlane.xlu0 %416
        %v418 = vrot.slane %v417, 4
        %v419 = vadd.f32 %v417, %v418
        %v420 = vrot.slane %v419, 2
        %v421 = vadd.f32 %v419, %v420
        %v422 = vrot.slane %v421, 1
        %v423 = vadd.f32 %v421, %v422
        %s424 = vtos %v423
        %426 = vrot.lane.b32.xlu0 %v219, 16
        %v427 = vpop.permute.xlu0 %426
        %v428 = vrot.slane %v427, 4
        %vm429 = vcmask 130048
        %v430 = vsel %vm429, %v428, %v427
        %v432 = vsub.f32 %v219, %v430
        %v433 = vmul.f32 %v432, %v432
        %v435 = vcombine.high %v433, %v433
        %436 = vrot.lane.b32.xlu0 %v433, 112
        %v437 = vpop.permute.xlu0 %436
        %438 = vrot.lane.b32.xlu0 %v435, 112
        %v439 = vpop.permute.xlu0 %438
        %vm440 = vcmask 916480
        %v441 = vsel %vm440, %v437, %v439
        %v444 = vsel %vm233, %v441, 0.0
        %vm445 = vcmask 912384
        %v446 = vsel %vm445, %v439, 0.0
        %v447 = vadd.f32 %v444, %v446
        %448 = vadd.xlane.f32.xlu0 %v447
        %v449 = vpop.xlane.xlu0 %448
        %v450 = vrot.slane %v449, 4
        %v451 = vadd.f32 %v449, %v450
        %v452 = vrot.slane %v451, 2
        %v453 = vadd.f32 %v451, %v452
        %v454 = vrot.slane %v453, 1
        %v455 = vadd.f32 %v453, %v454
        %s456 = vtos %v455
        %s457 = sadd.f32 %s424, %s456
        %v458 = vcombine.high %v219, %v219
        %459 = vrot.lane.b32.xlu0 %v458, 16
        %v460 = vpop.permute.xlu0 %459
        %462 = vst.msk [vmem:[#allocation2] sm:$0xf] %vm414, %v460
        %463 = vrot.lane.b32.xlu0 %v219, 1
        %v464 = vpop.permute.xlu0 %463
        %v465 = vrot.slane %v464, 4
        %vm466 = vcmask 7168
        %v467 = vsel %vm466, %v465, %v464
        %v469 = vsub.f32 %v219, %v467
        %v470 = vlaneseq
        %v471 = vand.u32 %v470, 127
        %v472 = vadd.s32 %v471, 128
        %vm473 = vcmp.lt.s32.totalorder %v471, 0
        %v474 = vsub.s32 0, %v471
        %v475 = vsel %vm473, %v474, %v471
        %v476 = vshrl.u32 %v475, 4
        %v477 = vand.u32 %v475, 15
        %v478 = vsub.s32 0, %v477
        %v479 = vsel %vm473, %v478, %v477
        %vm480 = vcmp.lt.s32.totalorder %v472, 0
        %v481 = vsub.s32 0, %v472
        %v482 = vsel %vm480, %v481, %v472
        %v483 = vshrl.u32 %v482, 4
        %v484 = vand.u32 %v482, 15
        %v485 = vsub.s32 0, %v484
        %v486 = vsel %vm480, %v485, %v484
        %vm487 = vcmp.ne.s32.totalorder %v479, 0
        %vm488 = vcmp.ne.s32.totalorder %v486, 0
        %vm489 = vcmp.lt.s32.totalorder %v479, 0
        %vm490 = vcmp.lt.s32.totalorder %v486, 0
        %vm491 = vmand %vm489, %vm487
        %vm492 = vmand %vm490, %vm488
        %v493 = vadd.s32 %v479, 16
        %v494 = vadd.s32 %v486, 16
        %v495 = vsel %vm491, %v493, %v479
        %v496 = vsel %vm492, %v494, %v486
        %vm497 = vcmp.ne.s32.totalorder %v495, 15
        %vm498 = vcmp.ne.s32.totalorder %v496, 15
        %v499 = vsel %vm497, 1, 0
        %v500 = vsel %vm498, 1, 0
        %vm501 = vcmp.eq.s32.totalorder %v499, 1
        %vm502 = vcmp.eq.s32.totalorder %v500, 1
        %v504 = vcombine.high %v469, %v469
        %505 = vrot.lane.b32.xlu0 %v469, 127
        %v506 = vpop.permute.xlu0 %505
        %507 = vrot.lane.b32.xlu0 %v504, 127
        %v508 = vpop.permute.xlu0 %507
        %vm509 = vcmask 1039360
        %v510 = vsel %vm509, %v506, %v508
        %v513 = vsel %vm501, %v510, 0.0
        %v514 = vsel %vm502, %v508, 0.0
        %v515 = vmul.f32 %v513, %v513
        %v516 = vmul.f32 %v514, %v514
        %v517 = vsel %vm233, %v515, 0.0
        %vm518 = vcmask 1035264
        %v519 = vsel %vm518, %v516, 0.0
        %v520 = vadd.f32 %v517, %v519
        %521 = vadd.xlane.f32.xlu0 %v520
        %v522 = vpop.xlane.xlu0 %521
        %v523 = vrot.slane %v522, 4
        %v524 = vadd.f32 %v522, %v523
        %v525 = vrot.slane %v524, 2
        %v526 = vadd.f32 %v524, %v525
        %v527 = vrot.slane %v526, 1
        %v528 = vadd.f32 %v526, %v527
        %s529 = vtos %v528
        %v530 = vrot.slane %v219, 7
        %v532 = vsub.f32 %v219, %v530
        %v533 = vmul.f32 %v532, %v532
        %v535 = vcombine.high %v533, %v533
        %v536 = vrot.slane %v533, 1
        %v537 = vrot.slane %v535, 1
        %vm540 = vcmask 1042432
        %v541 = vsel %vm540, %v536, 0.0
        %v542 = vsel %vm540, %v537, 0.0
        %v543 = vadd.f32 %v541, %v542
        %544 = vadd.xlane.f32.xlu0 %v543
        %v545 = vpop.xlane.xlu0 %544
        %v546 = vrot.slane %v545, 4
        %v547 = vadd.f32 %v545, %v546
        %v548 = vrot.slane %v547, 2
        %v549 = vadd.f32 %v547, %v548
        %v550 = vrot.slane %v549, 1
        %v551 = vadd.f32 %v549, %v550
        %s552 = vtos %v551
        %vm553 = vcmp.eq.s32.totalorder %v471, 0
        %v554 = vstv %s245
        %v555 = vsel %vm553, %v554, 0.0
        %vm556 = vcmp.eq.s32.totalorder %v471, 1
        %v557 = vstv %s457
        %v558 = vsel %vm556, %v557, 0.0
        %v559 = vadd.f32 %v555, %v558
        %vm560 = vcmp.eq.s32.totalorder %v471, 2
        %v561 = vstv %s529
        %v562 = vsel %vm560, %v561, 0.0
        %v563 = vadd.f32 %v559, %v562
        %vm564 = vcmp.eq.s32.totalorder %v471, 3
        %v565 = vstv %s552
        %v566 = vsel %vm564, %v565, 0.0
        %v567 = vadd.f32 %v563, %v566
        %vm568 = vcmp.eq.s32.totalorder %v471, 4
        %v569 = vstv %s410
        %v570 = vsel %vm568, %v569, 0.0
        %v571 = vadd.f32 %v567, %v570
        %v572 = vld [vmem:[%s216] sm:$0x1]
        %v573 = vadd.f32 %v572, %v571
        %574 = vst [vmem:[%s216] sm:$0x1] %v573
        %s575 = sand.u32 %s98, 1
        %s576 = scalar_lea.sflag [#allocation5], %s575
        %s577 = sand.u32 %s98, 1
        %s578 = scalar_lea.vmem [#allocation8], %s577
        // Predicated region
        $region41: #{tpu_custom_call.1} parent=27 // pred_check
          %p579 = pneg %p108
        $region42: #{tpu_custom_call.1} parent=27 // pred_check_branch
          %581 = sbr.rel (%p579) target = $region44
        $region43: #{tpu_custom_call.1} parent=27 // pred_region
          %s583 = ssub.s32 16, 16
          %584 = vsyncadd %s576, %s583
          %s585 = smul.addr %s26, 16
          %s586 = scalar_lea.hbm %s2, %s585
          %s588 = sshll.u32 %s578, 4
          %s589 = int_to_ptr.vmem [resolvable:$true] %s588
          %591 = dma.vmem_to_hbm [thread:$0]  %s589, 16, %s586, %s576
        $region44: #{tpu_custom_call.1} parent=27 // pred_fallthru
          _
      $region28: #{tpu_custom_call.1} parent=5 // pred_fallthru
        _
      %p592 = scmp.le.s32.totalorder 2, %s17
      // Predicated region
      $region45: #{tpu_custom_call.1} parent=5 // pred_check
        %p593 = pneg %p592
      $region46: #{tpu_custom_call.1} parent=5 // pred_check_branch
        %595 = sbr.rel (%p593) target = $region48
      $region47: #{tpu_custom_call.1} parent=5 // pred_region
        %s596 = ssub.s32 %s17, 2
        // Predicated region
        $region49: #{tpu_custom_call.1} parent=47 // pred_check
          %p597 = pneg %p114
        $region50: #{tpu_custom_call.1} parent=47 // pred_check_branch
          %599 = sbr.rel (%p597) target = $region52
        $region51: #{tpu_custom_call.1} parent=47 // pred_region
          %s600 = sand.u32 %s99, 1
          %s601 = scalar_lea.sflag [#allocation5], %s600
          %s602 = sand.u32 %s99, 1
          %s603 = scalar_lea.vmem [#allocation8], %s602
          %604 = dma.done %s601, 16
        $region52: #{tpu_custom_call.1} parent=47 // pred_fallthru
          _
      $region48: #{tpu_custom_call.1} parent=5 // pred_fallthru
        _
    $region6: #{tpu_custom_call.1} parent=1 // loop_footer
      %s21 = sadd.s32 1, %s17
    $region7: #{tpu_custom_call.1} parent=1 // loop_footer_branch
      %16 = sbr.rel target = $region3
    $region8: #{tpu_custom_call.1} parent=1 // loop_exit
      _
    %605 = vsyncpa [#allocation4], 1
    %s606 = scalar_lea.sflag [#allocation4], 1
    %607 = vsyncpa %s606, 1
    %608 = vsyncpa [#allocation7], 1
    %s609 = scalar_lea.sflag [#allocation7], 1
    %610 = vsyncpa %s609, 1
    %611 = vsyncpa [#allocation5], 1
    %s612 = scalar_lea.sflag [#allocation5], 1
    %613 = vsyncpa %s612, 1

</llo_original>
